<compile_context>
chip_gen: v7x
topology: tpu7x:2x2x1
jax: 0.10.0
libtpu: 0.0.40
codegen_flags: <defaults>
</compile_context>

<pallas_src>
import functools

import jax
import jax.numpy as jnp
from jax.experimental import pallas as pl
from jax.experimental.pallas import tpu as pltpu

B = 2              # batch
H = W = 28         # input spatial (288 = 2 * 12 * 12 implies 28x28 input)
C_OUT = 2          # conv output channels
K = 5              # conv kernel size
P = 12             # pooled spatial size ((28 - 5 + 1) // 2)
FC_IN = C_OUT * P * P    # 288
FC_OUT = 10


def model_kernel(batch, xt_ref, cw_ref, fcw_ref, out_ref):
    """Fused conv + relu + maxpool + fc (fc bias added by the caller).

    xt_ref : (25, 4*batch, 144) VMEM f32  per-tap bank, pool offsets packed in sublanes
    cw_ref : (52,)              SMEM f32  conv weight [oc*25 + ki*5 + kj], bias at [50+oc]
    fcw_ref: (288, 10)          VMEM f32  fc weight transposed (row = oc*144 + i*12 + j)
    out_ref: (batch, 10)        VMEM f32  logits without fc bias
    """
    pooled = []
    for oc in range(C_OUT):
        # 25-tap weighted accumulation, once per output channel, on full vregs.
        # Conv bias folded into the first tap's accumulator init.
        acc = cw_ref[oc * K * K] * xt_ref[0] + cw_ref[C_OUT * K * K + oc]
        for t in range(1, K * K):
            acc = acc + cw_ref[oc * K * K + t] * xt_ref[t]
        acc = jnp.maximum(acc, 0.0)                                  # ReLU

        # 2x2 max-pool: rows are (di*2+dj)*batch + b. Two cyclic sublane rolls
        # put max over all four pool offsets into every row; rows 0..batch-1
        # then hold the pooled result for each batch element.
        acc = jnp.maximum(acc, pltpu.roll(acc, shift=2 * batch, axis=0))
        acc = jnp.maximum(acc, pltpu.roll(acc, shift=batch, axis=0))
        pooled.append(acc)                                           # (4*batch, 144)

    # Linear(288, 10): two MXU matmuls against sublane-aligned row slices of the
    # fc weight (rows 0 and 144 are multiples of 8) -- equivalent to
    # dot(concat(pooled, axis=-1), fcw) but with no unaligned 144-lane concat.
    logits = None
    for oc in range(C_OUT):
        part = jnp.dot(pooled[oc], fcw_ref[oc * P * P:(oc + 1) * P * P, :],
                       preferred_element_type=jnp.float32)           # (4*batch, 10)
        logits = part if logits is None else logits + part
    out_ref[...] = logits[0:batch, :]


def prepare_params(conv_w, conv_b, fc_w, fc_b):
    """One-time parameter repacking (kept out of the per-call path)."""
    cw = jnp.concatenate(
        [conv_w.reshape(-1), conv_b.reshape(-1)]).astype(jnp.float32)    # (52,)
    fcw_t = fc_w.T.astype(jnp.float32)                                   # (288, 10)
    fcb = fc_b.astype(jnp.float32)                                       # (10,)
    return cw, fcw_t, fcb


@jax.jit
def model_forward(x, cw, fcw_t, fcb):
    """x: (B, 1, 28, 28) f32 NCHW; returns (B, 10) logits."""
    Bn = x.shape[0]

    # Single fused patch-extraction op:
    #   patches[b, ki*5 + kj, h, w] = x[b, 0, h + ki, w + kj]        (B, 25, 24, 24)
    patches = jax.lax.conv_general_dilated_patches(
        x.astype(jnp.float32), filter_shape=(K, K), window_strides=(1, 1),
        padding="VALID", dimension_numbers=("NCHW", "OIHW", "NCHW"))

    # Pack pool offsets (di, dj) and batch into the sublane dimension:
    #   xt[t, (di*2+dj)*B + b, i*12 + j] = patches[b, t, 2*i + di, 2*j + dj]
    xt = (patches.reshape(Bn, K * K, P, 2, P, 2)
          .transpose(1, 3, 5, 0, 2, 4)
          .reshape(K * K, 4 * Bn, P * P))                            # (25, 4B, 144)

    logits = pl.pallas_call(
        functools.partial(model_kernel, Bn),
        out_shape=jax.ShapeDtypeStruct((Bn, FC_OUT), jnp.float32),
        in_specs=[
            pl.BlockSpec(memory_space=pltpu.MemorySpace.VMEM),   # xt bank
            pl.BlockSpec(memory_space=pltpu.MemorySpace.SMEM),   # conv w+b scalars
            pl.BlockSpec(memory_space=pltpu.MemorySpace.VMEM),   # fc weight (unpadded)
        ],
        out_specs=pl.BlockSpec(memory_space=pltpu.MemorySpace.VMEM),
    )(xt, cw, fcw_t)

    # fc bias: one tiny fused op on (B, 10); cheaper than an extra DMA descriptor.
    return logits + fcb[None, :]


def reference_forward(x, conv_w, conv_b, fc_w, fc_b):
    """Pure-JAX reference matching the PyTorch module."""
    y = jax.lax.conv_general_dilated(
        x, conv_w, window_strides=(1, 1), padding="VALID",
        dimension_numbers=("NCHW", "OIHW", "NCHW"))
    y = y + conv_b.reshape(1, -1, 1, 1)
    y = jnp.maximum(y, 0.0)
    y = jax.lax.reduce_window(y, -jnp.inf, jax.lax.max,
                              (1, 1, 2, 2), (1, 1, 2, 2), "VALID")
    y = y.reshape(-1, FC_IN)
    return y @ fc_w.T + fc_b


if __name__ == "__main__":
    key = jax.random.PRNGKey(0)
    kx, kcw, kcb, kfw, kfb = jax.random.split(key, 5)

    x = jax.random.normal(kx, (B, 1, H, W), dtype=jnp.float32)
    conv_w = 0.1 * jax.random.normal(kcw, (C_OUT, 1, K, K), dtype=jnp.float32)
    conv_b = 0.1 * jax.random.normal(kcb, (C_OUT,), dtype=jnp.float32)
    fc_w = 0.05 * jax.random.normal(kfw, (FC_OUT, FC_IN), dtype=jnp.float32)
    fc_b = 0.05 * jax.random.normal(kfb, (FC_OUT,), dtype=jnp.float32)

    cw, fcw_t, fcb = prepare_params(conv_w, conv_b, fc_w, fc_b)   # once, not per call
    out = model_forward(x, cw, fcw_t, fcb)
    out = jax.block_until_ready(out)

    ref = reference_forward(x, conv_w, conv_b, fc_w, fc_b)
    assert out.shape == (B, FC_OUT)
    assert jnp.allclose(out, ref, rtol=1e-4, atol=1e-4), (out, ref)

    print("KERNEL_OK")
</pallas_src>

<mosaic_0001>
module attributes {stable_mosaic.version = 11 : i64} {
  func.func @model_kernel(%arg0: memref<25x8x144xf32, #tpu.memory_space<vmem>>, %arg1: memref<52xf32, #tpu.memory_space<smem>>, %arg2: memref<288x10xf32, #tpu.memory_space<vmem>>, %arg3: memref<2x10xf32, #tpu.memory_space<vmem>>) attributes {dimension_semantics = [], scalar_prefetch = 0 : i64, scratch_operands = 0 : i64, tpu.core_type = #tpu.core_type<tc>} {
    %c0 = arith.constant 0 : index
    %0 = memref.load %arg1[%c0] : memref<52xf32, #tpu.memory_space<smem>>
    %c0_0 = arith.constant 0 : index
    %c0_1 = arith.constant 0 : index
    %c0_2 = arith.constant 0 : index
    %1 = vector.load %arg0[%c0_0, %c0_1, %c0_2] : memref<25x8x144xf32, #tpu.memory_space<vmem>>, vector<1x8x144xf32>
    %2 = vector.shape_cast %1 : vector<1x8x144xf32> to vector<8x144xf32>
    %3 = vector.broadcast %0 : f32 to vector<8x144xf32>
    %4 = arith.mulf %3, %2 : vector<8x144xf32>
    %c50 = arith.constant 50 : index
    %5 = memref.load %arg1[%c50] : memref<52xf32, #tpu.memory_space<smem>>
    %6 = vector.broadcast %5 : f32 to vector<8x144xf32>
    %7 = arith.addf %4, %6 : vector<8x144xf32>
    %c1 = arith.constant 1 : index
    %8 = memref.load %arg1[%c1] : memref<52xf32, #tpu.memory_space<smem>>
    %c1_3 = arith.constant 1 : index
    %c0_4 = arith.constant 0 : index
    %c0_5 = arith.constant 0 : index
    %9 = vector.load %arg0[%c1_3, %c0_4, %c0_5] : memref<25x8x144xf32, #tpu.memory_space<vmem>>, vector<1x8x144xf32>
    %10 = vector.shape_cast %9 : vector<1x8x144xf32> to vector<8x144xf32>
    %11 = vector.broadcast %8 : f32 to vector<8x144xf32>
    %12 = arith.mulf %11, %10 : vector<8x144xf32>
    %13 = arith.addf %7, %12 : vector<8x144xf32>
    %c2 = arith.constant 2 : index
    %14 = memref.load %arg1[%c2] : memref<52xf32, #tpu.memory_space<smem>>
    %c2_6 = arith.constant 2 : index
    %c0_7 = arith.constant 0 : index
    %c0_8 = arith.constant 0 : index
    %15 = vector.load %arg0[%c2_6, %c0_7, %c0_8] : memref<25x8x144xf32, #tpu.memory_space<vmem>>, vector<1x8x144xf32>
    %16 = vector.shape_cast %15 : vector<1x8x144xf32> to vector<8x144xf32>
    %17 = vector.broadcast %14 : f32 to vector<8x144xf32>
    %18 = arith.mulf %17, %16 : vector<8x144xf32>
    %19 = arith.addf %13, %18 : vector<8x144xf32>
    %c3 = arith.constant 3 : index
    %20 = memref.load %arg1[%c3] : memref<52xf32, #tpu.memory_space<smem>>
    %c3_9 = arith.constant 3 : index
    %c0_10 = arith.constant 0 : index
    %c0_11 = arith.constant 0 : index
    %21 = vector.load %arg0[%c3_9, %c0_10, %c0_11] : memref<25x8x144xf32, #tpu.memory_space<vmem>>, vector<1x8x144xf32>
    %22 = vector.shape_cast %21 : vector<1x8x144xf32> to vector<8x144xf32>
    %23 = vector.broadcast %20 : f32 to vector<8x144xf32>
    %24 = arith.mulf %23, %22 : vector<8x144xf32>
    %25 = arith.addf %19, %24 : vector<8x144xf32>
    %c4 = arith.constant 4 : index
    %26 = memref.load %arg1[%c4] : memref<52xf32, #tpu.memory_space<smem>>
    %c4_12 = arith.constant 4 : index
    %c0_13 = arith.constant 0 : index
    %c0_14 = arith.constant 0 : index
    %27 = vector.load %arg0[%c4_12, %c0_13, %c0_14] : memref<25x8x144xf32, #tpu.memory_space<vmem>>, vector<1x8x144xf32>
    %28 = vector.shape_cast %27 : vector<1x8x144xf32> to vector<8x144xf32>
    %29 = vector.broadcast %26 : f32 to vector<8x144xf32>
    %30 = arith.mulf %29, %28 : vector<8x144xf32>
    %31 = arith.addf %25, %30 : vector<8x144xf32>
    %c5 = arith.constant 5 : index
    %32 = memref.load %arg1[%c5] : memref<52xf32, #tpu.memory_space<smem>>
    %c5_15 = arith.constant 5 : index
    %c0_16 = arith.constant 0 : index
    %c0_17 = arith.constant 0 : index
    %33 = vector.load %arg0[%c5_15, %c0_16, %c0_17] : memref<25x8x144xf32, #tpu.memory_space<vmem>>, vector<1x8x144xf32>
    %34 = vector.shape_cast %33 : vector<1x8x144xf32> to vector<8x144xf32>
    %35 = vector.broadcast %32 : f32 to vector<8x144xf32>
    %36 = arith.mulf %35, %34 : vector<8x144xf32>
    %37 = arith.addf %31, %36 : vector<8x144xf32>
    %c6 = arith.constant 6 : index
    %38 = memref.load %arg1[%c6] : memref<52xf32, #tpu.memory_space<smem>>
    %c6_18 = arith.constant 6 : index
    %c0_19 = arith.constant 0 : index
    %c0_20 = arith.constant 0 : index
    %39 = vector.load %arg0[%c6_18, %c0_19, %c0_20] : memref<25x8x144xf32, #tpu.memory_space<vmem>>, vector<1x8x144xf32>
    %40 = vector.shape_cast %39 : vector<1x8x144xf32> to vector<8x144xf32>
    %41 = vector.broadcast %38 : f32 to vector<8x144xf32>
    %42 = arith.mulf %41, %40 : vector<8x144xf32>
    %43 = arith.addf %37, %42 : vector<8x144xf32>
    %c7 = arith.constant 7 : index
    %44 = memref.load %arg1[%c7] : memref<52xf32, #tpu.memory_space<smem>>
    %c7_21 = arith.constant 7 : index
    %c0_22 = arith.constant 0 : index
    %c0_23 = arith.constant 0 : index
    %45 = vector.load %arg0[%c7_21, %c0_22, %c0_23] : memref<25x8x144xf32, #tpu.memory_space<vmem>>, vector<1x8x144xf32>
    %46 = vector.shape_cast %45 : vector<1x8x144xf32> to vector<8x144xf32>
    %47 = vector.broadcast %44 : f32 to vector<8x144xf32>
    %48 = arith.mulf %47, %46 : vector<8x144xf32>
    %49 = arith.addf %43, %48 : vector<8x144xf32>
    %c8 = arith.constant 8 : index
    %50 = memref.load %arg1[%c8] : memref<52xf32, #tpu.memory_space<smem>>
    %c8_24 = arith.constant 8 : index
    %c0_25 = arith.constant 0 : index
    %c0_26 = arith.constant 0 : index
    %51 = vector.load %arg0[%c8_24, %c0_25, %c0_26] : memref<25x8x144xf32, #tpu.memory_space<vmem>>, vector<1x8x144xf32>
    %52 = vector.shape_cast %51 : vector<1x8x144xf32> to vector<8x144xf32>
    %53 = vector.broadcast %50 : f32 to vector<8x144xf32>
    %54 = arith.mulf %53, %52 : vector<8x144xf32>
    %55 = arith.addf %49, %54 : vector<8x144xf32>
    %c9 = arith.constant 9 : index
    %56 = memref.load %arg1[%c9] : memref<52xf32, #tpu.memory_space<smem>>
    %c9_27 = arith.constant 9 : index
    %c0_28 = arith.constant 0 : index
    %c0_29 = arith.constant 0 : index
    %57 = vector.load %arg0[%c9_27, %c0_28, %c0_29] : memref<25x8x144xf32, #tpu.memory_space<vmem>>, vector<1x8x144xf32>
    %58 = vector.shape_cast %57 : vector<1x8x144xf32> to vector<8x144xf32>
    %59 = vector.broadcast %56 : f32 to vector<8x144xf32>
    %60 = arith.mulf %59, %58 : vector<8x144xf32>
    %61 = arith.addf %55, %60 : vector<8x144xf32>
    %c10 = arith.constant 10 : index
    %62 = memref.load %arg1[%c10] : memref<52xf32, #tpu.memory_space<smem>>
    %c10_30 = arith.constant 10 : index
    %c0_31 = arith.constant 0 : index
    %c0_32 = arith.constant 0 : index
    %63 = vector.load %arg0[%c10_30, %c0_31, %c0_32] : memref<25x8x144xf32, #tpu.memory_space<vmem>>, vector<1x8x144xf32>
    %64 = vector.shape_cast %63 : vector<1x8x144xf32> to vector<8x144xf32>
    %65 = vector.broadcast %62 : f32 to vector<8x144xf32>
    %66 = arith.mulf %65, %64 : vector<8x144xf32>
    %67 = arith.addf %61, %66 : vector<8x144xf32>
    %c11 = arith.constant 11 : index
    %68 = memref.load %arg1[%c11] : memref<52xf32, #tpu.memory_space<smem>>
    %c11_33 = arith.constant 11 : index
    %c0_34 = arith.constant 0 : index
    %c0_35 = arith.constant 0 : index
    %69 = vector.load %arg0[%c11_33, %c0_34, %c0_35] : memref<25x8x144xf32, #tpu.memory_space<vmem>>, vector<1x8x144xf32>
    %70 = vector.shape_cast %69 : vector<1x8x144xf32> to vector<8x144xf32>
    %71 = vector.broadcast %68 : f32 to vector<8x144xf32>
    %72 = arith.mulf %71, %70 : vector<8x144xf32>
    %73 = arith.addf %67, %72 : vector<8x144xf32>
    %c12 = arith.constant 12 : index
    %74 = memref.load %arg1[%c12] : memref<52xf32, #tpu.memory_space<smem>>
    %c12_36 = arith.constant 12 : index
    %c0_37 = arith.constant 0 : index
    %c0_38 = arith.constant 0 : index
    %75 = vector.load %arg0[%c12_36, %c0_37, %c0_38] : memref<25x8x144xf32, #tpu.memory_space<vmem>>, vector<1x8x144xf32>
    %76 = vector.shape_cast %75 : vector<1x8x144xf32> to vector<8x144xf32>
    %77 = vector.broadcast %74 : f32 to vector<8x144xf32>
    %78 = arith.mulf %77, %76 : vector<8x144xf32>
    %79 = arith.addf %73, %78 : vector<8x144xf32>
    %c13 = arith.constant 13 : index
    %80 = memref.load %arg1[%c13] : memref<52xf32, #tpu.memory_space<smem>>
    %c13_39 = arith.constant 13 : index
    %c0_40 = arith.constant 0 : index
    %c0_41 = arith.constant 0 : index
    %81 = vector.load %arg0[%c13_39, %c0_40, %c0_41] : memref<25x8x144xf32, #tpu.memory_space<vmem>>, vector<1x8x144xf32>
    %82 = vector.shape_cast %81 : vector<1x8x144xf32> to vector<8x144xf32>
    %83 = vector.broadcast %80 : f32 to vector<8x144xf32>
    %84 = arith.mulf %83, %82 : vector<8x144xf32>
    %85 = arith.addf %79, %84 : vector<8x144xf32>
    %c14 = arith.constant 14 : index
    %86 = memref.load %arg1[%c14] : memref<52xf32, #tpu.memory_space<smem>>
    %c14_42 = arith.constant 14 : index
    %c0_43 = arith.constant 0 : index
    %c0_44 = arith.constant 0 : index
    %87 = vector.load %arg0[%c14_42, %c0_43, %c0_44] : memref<25x8x144xf32, #tpu.memory_space<vmem>>, vector<1x8x144xf32>
    %88 = vector.shape_cast %87 : vector<1x8x144xf32> to vector<8x144xf32>
    %89 = vector.broadcast %86 : f32 to vector<8x144xf32>
    %90 = arith.mulf %89, %88 : vector<8x144xf32>
    %91 = arith.addf %85, %90 : vector<8x144xf32>
    %c15 = arith.constant 15 : index
    %92 = memref.load %arg1[%c15] : memref<52xf32, #tpu.memory_space<smem>>
    %c15_45 = arith.constant 15 : index
    %c0_46 = arith.constant 0 : index
    %c0_47 = arith.constant 0 : index
    %93 = vector.load %arg0[%c15_45, %c0_46, %c0_47] : memref<25x8x144xf32, #tpu.memory_space<vmem>>, vector<1x8x144xf32>
    %94 = vector.shape_cast %93 : vector<1x8x144xf32> to vector<8x144xf32>
    %95 = vector.broadcast %92 : f32 to vector<8x144xf32>
    %96 = arith.mulf %95, %94 : vector<8x144xf32>
    %97 = arith.addf %91, %96 : vector<8x144xf32>
    %c16 = arith.constant 16 : index
    %98 = memref.load %arg1[%c16] : memref<52xf32, #tpu.memory_space<smem>>
    %c16_48 = arith.constant 16 : index
    %c0_49 = arith.constant 0 : index
    %c0_50 = arith.constant 0 : index
    %99 = vector.load %arg0[%c16_48, %c0_49, %c0_50] : memref<25x8x144xf32, #tpu.memory_space<vmem>>, vector<1x8x144xf32>
    %100 = vector.shape_cast %99 : vector<1x8x144xf32> to vector<8x144xf32>
    %101 = vector.broadcast %98 : f32 to vector<8x144xf32>
    %102 = arith.mulf %101, %100 : vector<8x144xf32>
    %103 = arith.addf %97, %102 : vector<8x144xf32>
    %c17 = arith.constant 17 : index
    %104 = memref.load %arg1[%c17] : memref<52xf32, #tpu.memory_space<smem>>
    %c17_51 = arith.constant 17 : index
    %c0_52 = arith.constant 0 : index
    %c0_53 = arith.constant 0 : index
    %105 = vector.load %arg0[%c17_51, %c0_52, %c0_53] : memref<25x8x144xf32, #tpu.memory_space<vmem>>, vector<1x8x144xf32>
    %106 = vector.shape_cast %105 : vector<1x8x144xf32> to vector<8x144xf32>
    %107 = vector.broadcast %104 : f32 to vector<8x144xf32>
    %108 = arith.mulf %107, %106 : vector<8x144xf32>
    %109 = arith.addf %103, %108 : vector<8x144xf32>
    %c18 = arith.constant 18 : index
    %110 = memref.load %arg1[%c18] : memref<52xf32, #tpu.memory_space<smem>>
    %c18_54 = arith.constant 18 : index
    %c0_55 = arith.constant 0 : index
    %c0_56 = arith.constant 0 : index
    %111 = vector.load %arg0[%c18_54, %c0_55, %c0_56] : memref<25x8x144xf32, #tpu.memory_space<vmem>>, vector<1x8x144xf32>
    %112 = vector.shape_cast %111 : vector<1x8x144xf32> to vector<8x144xf32>
    %113 = vector.broadcast %110 : f32 to vector<8x144xf32>
    %114 = arith.mulf %113, %112 : vector<8x144xf32>
    %115 = arith.addf %109, %114 : vector<8x144xf32>
    %c19 = arith.constant 19 : index
    %116 = memref.load %arg1[%c19] : memref<52xf32, #tpu.memory_space<smem>>
    %c19_57 = arith.constant 19 : index
    %c0_58 = arith.constant 0 : index
    %c0_59 = arith.constant 0 : index
    %117 = vector.load %arg0[%c19_57, %c0_58, %c0_59] : memref<25x8x144xf32, #tpu.memory_space<vmem>>, vector<1x8x144xf32>
    %118 = vector.shape_cast %117 : vector<1x8x144xf32> to vector<8x144xf32>
    %119 = vector.broadcast %116 : f32 to vector<8x144xf32>
    %120 = arith.mulf %119, %118 : vector<8x144xf32>
    %121 = arith.addf %115, %120 : vector<8x144xf32>
    %c20 = arith.constant 20 : index
    %122 = memref.load %arg1[%c20] : memref<52xf32, #tpu.memory_space<smem>>
    %c20_60 = arith.constant 20 : index
    %c0_61 = arith.constant 0 : index
    %c0_62 = arith.constant 0 : index
    %123 = vector.load %arg0[%c20_60, %c0_61, %c0_62] : memref<25x8x144xf32, #tpu.memory_space<vmem>>, vector<1x8x144xf32>
    %124 = vector.shape_cast %123 : vector<1x8x144xf32> to vector<8x144xf32>
    %125 = vector.broadcast %122 : f32 to vector<8x144xf32>
    %126 = arith.mulf %125, %124 : vector<8x144xf32>
    %127 = arith.addf %121, %126 : vector<8x144xf32>
    %c21 = arith.constant 21 : index
    %128 = memref.load %arg1[%c21] : memref<52xf32, #tpu.memory_space<smem>>
    %c21_63 = arith.constant 21 : index
    %c0_64 = arith.constant 0 : index
    %c0_65 = arith.constant 0 : index
    %129 = vector.load %arg0[%c21_63, %c0_64, %c0_65] : memref<25x8x144xf32, #tpu.memory_space<vmem>>, vector<1x8x144xf32>
    %130 = vector.shape_cast %129 : vector<1x8x144xf32> to vector<8x144xf32>
    %131 = vector.broadcast %128 : f32 to vector<8x144xf32>
    %132 = arith.mulf %131, %130 : vector<8x144xf32>
    %133 = arith.addf %127, %132 : vector<8x144xf32>
    %c22 = arith.constant 22 : index
    %134 = memref.load %arg1[%c22] : memref<52xf32, #tpu.memory_space<smem>>
    %c22_66 = arith.constant 22 : index
    %c0_67 = arith.constant 0 : index
    %c0_68 = arith.constant 0 : index
    %135 = vector.load %arg0[%c22_66, %c0_67, %c0_68] : memref<25x8x144xf32, #tpu.memory_space<vmem>>, vector<1x8x144xf32>
    %136 = vector.shape_cast %135 : vector<1x8x144xf32> to vector<8x144xf32>
    %137 = vector.broadcast %134 : f32 to vector<8x144xf32>
    %138 = arith.mulf %137, %136 : vector<8x144xf32>
    %139 = arith.addf %133, %138 : vector<8x144xf32>
    %c23 = arith.constant 23 : index
    %140 = memref.load %arg1[%c23] : memref<52xf32, #tpu.memory_space<smem>>
    %c23_69 = arith.constant 23 : index
    %c0_70 = arith.constant 0 : index
    %c0_71 = arith.constant 0 : index
    %141 = vector.load %arg0[%c23_69, %c0_70, %c0_71] : memref<25x8x144xf32, #tpu.memory_space<vmem>>, vector<1x8x144xf32>
    %142 = vector.shape_cast %141 : vector<1x8x144xf32> to vector<8x144xf32>
    %143 = vector.broadcast %140 : f32 to vector<8x144xf32>
    %144 = arith.mulf %143, %142 : vector<8x144xf32>
    %145 = arith.addf %139, %144 : vector<8x144xf32>
    %c24 = arith.constant 24 : index
    %146 = memref.load %arg1[%c24] : memref<52xf32, #tpu.memory_space<smem>>
    %c24_72 = arith.constant 24 : index
    %c0_73 = arith.constant 0 : index
    %c0_74 = arith.constant 0 : index
    %147 = vector.load %arg0[%c24_72, %c0_73, %c0_74] : memref<25x8x144xf32, #tpu.memory_space<vmem>>, vector<1x8x144xf32>
    %148 = vector.shape_cast %147 : vector<1x8x144xf32> to vector<8x144xf32>
    %149 = vector.broadcast %146 : f32 to vector<8x144xf32>
    %150 = arith.mulf %149, %148 : vector<8x144xf32>
    %151 = arith.addf %145, %150 : vector<8x144xf32>
    %cst = arith.constant 0.000000e+00 : f32
    %152 = vector.broadcast %cst : f32 to vector<8x144xf32>
    %153 = arith.maximumf %151, %152 : vector<8x144xf32>
    %c4_i32 = arith.constant 4 : i32
    %154 = tpu.dynamic_rotate %153 by %c4_i32 dim 0 : vector<8x144xf32>, i32 -> vector<8x144xf32>
    %155 = arith.maximumf %153, %154 : vector<8x144xf32>
    %c2_i32 = arith.constant 2 : i32
    %156 = tpu.dynamic_rotate %155 by %c2_i32 dim 0 : vector<8x144xf32>, i32 -> vector<8x144xf32>
    %157 = arith.maximumf %155, %156 : vector<8x144xf32>
    %c25 = arith.constant 25 : index
    %158 = memref.load %arg1[%c25] : memref<52xf32, #tpu.memory_space<smem>>
    %c0_75 = arith.constant 0 : index
    %c0_76 = arith.constant 0 : index
    %c0_77 = arith.constant 0 : index
    %159 = vector.load %arg0[%c0_75, %c0_76, %c0_77] : memref<25x8x144xf32, #tpu.memory_space<vmem>>, vector<1x8x144xf32>
    %160 = vector.shape_cast %159 : vector<1x8x144xf32> to vector<8x144xf32>
    %161 = vector.broadcast %158 : f32 to vector<8x144xf32>
    %162 = arith.mulf %161, %160 : vector<8x144xf32>
    %c51 = arith.constant 51 : index
    %163 = memref.load %arg1[%c51] : memref<52xf32, #tpu.memory_space<smem>>
    %164 = vector.broadcast %163 : f32 to vector<8x144xf32>
    %165 = arith.addf %162, %164 : vector<8x144xf32>
    %c26 = arith.constant 26 : index
    %166 = memref.load %arg1[%c26] : memref<52xf32, #tpu.memory_space<smem>>
    %c1_78 = arith.constant 1 : index
    %c0_79 = arith.constant 0 : index
    %c0_80 = arith.constant 0 : index
    %167 = vector.load %arg0[%c1_78, %c0_79, %c0_80] : memref<25x8x144xf32, #tpu.memory_space<vmem>>, vector<1x8x144xf32>
    %168 = vector.shape_cast %167 : vector<1x8x144xf32> to vector<8x144xf32>
    %169 = vector.broadcast %166 : f32 to vector<8x144xf32>
    %170 = arith.mulf %169, %168 : vector<8x144xf32>
    %171 = arith.addf %165, %170 : vector<8x144xf32>
    %c27 = arith.constant 27 : index
    %172 = memref.load %arg1[%c27] : memref<52xf32, #tpu.memory_space<smem>>
    %c2_81 = arith.constant 2 : index
    %c0_82 = arith.constant 0 : index
    %c0_83 = arith.constant 0 : index
    %173 = vector.load %arg0[%c2_81, %c0_82, %c0_83] : memref<25x8x144xf32, #tpu.memory_space<vmem>>, vector<1x8x144xf32>
    %174 = vector.shape_cast %173 : vector<1x8x144xf32> to vector<8x144xf32>
    %175 = vector.broadcast %172 : f32 to vector<8x144xf32>
    %176 = arith.mulf %175, %174 : vector<8x144xf32>
    %177 = arith.addf %171, %176 : vector<8x144xf32>
    %c28 = arith.constant 28 : index
    %178 = memref.load %arg1[%c28] : memref<52xf32, #tpu.memory_space<smem>>
    %c3_84 = arith.constant 3 : index
    %c0_85 = arith.constant 0 : index
    %c0_86 = arith.constant 0 : index
    %179 = vector.load %arg0[%c3_84, %c0_85, %c0_86] : memref<25x8x144xf32, #tpu.memory_space<vmem>>, vector<1x8x144xf32>
    %180 = vector.shape_cast %179 : vector<1x8x144xf32> to vector<8x144xf32>
    %181 = vector.broadcast %178 : f32 to vector<8x144xf32>
    %182 = arith.mulf %181, %180 : vector<8x144xf32>
    %183 = arith.addf %177, %182 : vector<8x144xf32>
    %c29 = arith.constant 29 : index
    %184 = memref.load %arg1[%c29] : memref<52xf32, #tpu.memory_space<smem>>
    %c4_87 = arith.constant 4 : index
    %c0_88 = arith.constant 0 : index
    %c0_89 = arith.constant 0 : index
    %185 = vector.load %arg0[%c4_87, %c0_88, %c0_89] : memref<25x8x144xf32, #tpu.memory_space<vmem>>, vector<1x8x144xf32>
    %186 = vector.shape_cast %185 : vector<1x8x144xf32> to vector<8x144xf32>
    %187 = vector.broadcast %184 : f32 to vector<8x144xf32>
    %188 = arith.mulf %187, %186 : vector<8x144xf32>
    %189 = arith.addf %183, %188 : vector<8x144xf32>
    %c30 = arith.constant 30 : index
    %190 = memref.load %arg1[%c30] : memref<52xf32, #tpu.memory_space<smem>>
    %c5_90 = arith.constant 5 : index
    %c0_91 = arith.constant 0 : index
    %c0_92 = arith.constant 0 : index
    %191 = vector.load %arg0[%c5_90, %c0_91, %c0_92] : memref<25x8x144xf32, #tpu.memory_space<vmem>>, vector<1x8x144xf32>
    %192 = vector.shape_cast %191 : vector<1x8x144xf32> to vector<8x144xf32>
    %193 = vector.broadcast %190 : f32 to vector<8x144xf32>
    %194 = arith.mulf %193, %192 : vector<8x144xf32>
    %195 = arith.addf %189, %194 : vector<8x144xf32>
    %c31 = arith.constant 31 : index
    %196 = memref.load %arg1[%c31] : memref<52xf32, #tpu.memory_space<smem>>
    %c6_93 = arith.constant 6 : index
    %c0_94 = arith.constant 0 : index
    %c0_95 = arith.constant 0 : index
    %197 = vector.load %arg0[%c6_93, %c0_94, %c0_95] : memref<25x8x144xf32, #tpu.memory_space<vmem>>, vector<1x8x144xf32>
    %198 = vector.shape_cast %197 : vector<1x8x144xf32> to vector<8x144xf32>
    %199 = vector.broadcast %196 : f32 to vector<8x144xf32>
    %200 = arith.mulf %199, %198 : vector<8x144xf32>
    %201 = arith.addf %195, %200 : vector<8x144xf32>
    %c32 = arith.constant 32 : index
    %202 = memref.load %arg1[%c32] : memref<52xf32, #tpu.memory_space<smem>>
    %c7_96 = arith.constant 7 : index
    %c0_97 = arith.constant 0 : index
    %c0_98 = arith.constant 0 : index
    %203 = vector.load %arg0[%c7_96, %c0_97, %c0_98] : memref<25x8x144xf32, #tpu.memory_space<vmem>>, vector<1x8x144xf32>
    %204 = vector.shape_cast %203 : vector<1x8x144xf32> to vector<8x144xf32>
    %205 = vector.broadcast %202 : f32 to vector<8x144xf32>
    %206 = arith.mulf %205, %204 : vector<8x144xf32>
    %207 = arith.addf %201, %206 : vector<8x144xf32>
    %c33 = arith.constant 33 : index
    %208 = memref.load %arg1[%c33] : memref<52xf32, #tpu.memory_space<smem>>
    %c8_99 = arith.constant 8 : index
    %c0_100 = arith.constant 0 : index
    %c0_101 = arith.constant 0 : index
    %209 = vector.load %arg0[%c8_99, %c0_100, %c0_101] : memref<25x8x144xf32, #tpu.memory_space<vmem>>, vector<1x8x144xf32>
    %210 = vector.shape_cast %209 : vector<1x8x144xf32> to vector<8x144xf32>
    %211 = vector.broadcast %208 : f32 to vector<8x144xf32>
    %212 = arith.mulf %211, %210 : vector<8x144xf32>
    %213 = arith.addf %207, %212 : vector<8x144xf32>
    %c34 = arith.constant 34 : index
    %214 = memref.load %arg1[%c34] : memref<52xf32, #tpu.memory_space<smem>>
    %c9_102 = arith.constant 9 : index
    %c0_103 = arith.constant 0 : index
    %c0_104 = arith.constant 0 : index
    %215 = vector.load %arg0[%c9_102, %c0_103, %c0_104] : memref<25x8x144xf32, #tpu.memory_space<vmem>>, vector<1x8x144xf32>
    %216 = vector.shape_cast %215 : vector<1x8x144xf32> to vector<8x144xf32>
    %217 = vector.broadcast %214 : f32 to vector<8x144xf32>
    %218 = arith.mulf %217, %216 : vector<8x144xf32>
    %219 = arith.addf %213, %218 : vector<8x144xf32>
    %c35 = arith.constant 35 : index
    %220 = memref.load %arg1[%c35] : memref<52xf32, #tpu.memory_space<smem>>
    %c10_105 = arith.constant 10 : index
    %c0_106 = arith.constant 0 : index
    %c0_107 = arith.constant 0 : index
    %221 = vector.load %arg0[%c10_105, %c0_106, %c0_107] : memref<25x8x144xf32, #tpu.memory_space<vmem>>, vector<1x8x144xf32>
    %222 = vector.shape_cast %221 : vector<1x8x144xf32> to vector<8x144xf32>
    %223 = vector.broadcast %220 : f32 to vector<8x144xf32>
    %224 = arith.mulf %223, %222 : vector<8x144xf32>
    %225 = arith.addf %219, %224 : vector<8x144xf32>
    %c36 = arith.constant 36 : index
    %226 = memref.load %arg1[%c36] : memref<52xf32, #tpu.memory_space<smem>>
    %c11_108 = arith.constant 11 : index
    %c0_109 = arith.constant 0 : index
    %c0_110 = arith.constant 0 : index
    %227 = vector.load %arg0[%c11_108, %c0_109, %c0_110] : memref<25x8x144xf32, #tpu.memory_space<vmem>>, vector<1x8x144xf32>
    %228 = vector.shape_cast %227 : vector<1x8x144xf32> to vector<8x144xf32>
    %229 = vector.broadcast %226 : f32 to vector<8x144xf32>
    %230 = arith.mulf %229, %228 : vector<8x144xf32>
    %231 = arith.addf %225, %230 : vector<8x144xf32>
    %c37 = arith.constant 37 : index
    %232 = memref.load %arg1[%c37] : memref<52xf32, #tpu.memory_space<smem>>
    %c12_111 = arith.constant 12 : index
    %c0_112 = arith.constant 0 : index
    %c0_113 = arith.constant 0 : index
    %233 = vector.load %arg0[%c12_111, %c0_112, %c0_113] : memref<25x8x144xf32, #tpu.memory_space<vmem>>, vector<1x8x144xf32>
    %234 = vector.shape_cast %233 : vector<1x8x144xf32> to vector<8x144xf32>
    %235 = vector.broadcast %232 : f32 to vector<8x144xf32>
    %236 = arith.mulf %235, %234 : vector<8x144xf32>
    %237 = arith.addf %231, %236 : vector<8x144xf32>
    %c38 = arith.constant 38 : index
    %238 = memref.load %arg1[%c38] : memref<52xf32, #tpu.memory_space<smem>>
    %c13_114 = arith.constant 13 : index
    %c0_115 = arith.constant 0 : index
    %c0_116 = arith.constant 0 : index
    %239 = vector.load %arg0[%c13_114, %c0_115, %c0_116] : memref<25x8x144xf32, #tpu.memory_space<vmem>>, vector<1x8x144xf32>
    %240 = vector.shape_cast %239 : vector<1x8x144xf32> to vector<8x144xf32>
    %241 = vector.broadcast %238 : f32 to vector<8x144xf32>
    %242 = arith.mulf %241, %240 : vector<8x144xf32>
    %243 = arith.addf %237, %242 : vector<8x144xf32>
    %c39 = arith.constant 39 : index
    %244 = memref.load %arg1[%c39] : memref<52xf32, #tpu.memory_space<smem>>
    %c14_117 = arith.constant 14 : index
    %c0_118 = arith.constant 0 : index
    %c0_119 = arith.constant 0 : index
    %245 = vector.load %arg0[%c14_117, %c0_118, %c0_119] : memref<25x8x144xf32, #tpu.memory_space<vmem>>, vector<1x8x144xf32>
    %246 = vector.shape_cast %245 : vector<1x8x144xf32> to vector<8x144xf32>
    %247 = vector.broadcast %244 : f32 to vector<8x144xf32>
    %248 = arith.mulf %247, %246 : vector<8x144xf32>
    %249 = arith.addf %243, %248 : vector<8x144xf32>
    %c40 = arith.constant 40 : index
    %250 = memref.load %arg1[%c40] : memref<52xf32, #tpu.memory_space<smem>>
    %c15_120 = arith.constant 15 : index
    %c0_121 = arith.constant 0 : index
    %c0_122 = arith.constant 0 : index
    %251 = vector.load %arg0[%c15_120, %c0_121, %c0_122] : memref<25x8x144xf32, #tpu.memory_space<vmem>>, vector<1x8x144xf32>
    %252 = vector.shape_cast %251 : vector<1x8x144xf32> to vector<8x144xf32>
    %253 = vector.broadcast %250 : f32 to vector<8x144xf32>
    %254 = arith.mulf %253, %252 : vector<8x144xf32>
    %255 = arith.addf %249, %254 : vector<8x144xf32>
    %c41 = arith.constant 41 : index
    %256 = memref.load %arg1[%c41] : memref<52xf32, #tpu.memory_space<smem>>
    %c16_123 = arith.constant 16 : index
    %c0_124 = arith.constant 0 : index
    %c0_125 = arith.constant 0 : index
    %257 = vector.load %arg0[%c16_123, %c0_124, %c0_125] : memref<25x8x144xf32, #tpu.memory_space<vmem>>, vector<1x8x144xf32>
    %258 = vector.shape_cast %257 : vector<1x8x144xf32> to vector<8x144xf32>
    %259 = vector.broadcast %256 : f32 to vector<8x144xf32>
    %260 = arith.mulf %259, %258 : vector<8x144xf32>
    %261 = arith.addf %255, %260 : vector<8x144xf32>
    %c42 = arith.constant 42 : index
    %262 = memref.load %arg1[%c42] : memref<52xf32, #tpu.memory_space<smem>>
    %c17_126 = arith.constant 17 : index
    %c0_127 = arith.constant 0 : index
    %c0_128 = arith.constant 0 : index
    %263 = vector.load %arg0[%c17_126, %c0_127, %c0_128] : memref<25x8x144xf32, #tpu.memory_space<vmem>>, vector<1x8x144xf32>
    %264 = vector.shape_cast %263 : vector<1x8x144xf32> to vector<8x144xf32>
    %265 = vector.broadcast %262 : f32 to vector<8x144xf32>
    %266 = arith.mulf %265, %264 : vector<8x144xf32>
    %267 = arith.addf %261, %266 : vector<8x144xf32>
    %c43 = arith.constant 43 : index
    %268 = memref.load %arg1[%c43] : memref<52xf32, #tpu.memory_space<smem>>
    %c18_129 = arith.constant 18 : index
    %c0_130 = arith.constant 0 : index
    %c0_131 = arith.constant 0 : index
    %269 = vector.load %arg0[%c18_129, %c0_130, %c0_131] : memref<25x8x144xf32, #tpu.memory_space<vmem>>, vector<1x8x144xf32>
    %270 = vector.shape_cast %269 : vector<1x8x144xf32> to vector<8x144xf32>
    %271 = vector.broadcast %268 : f32 to vector<8x144xf32>
    %272 = arith.mulf %271, %270 : vector<8x144xf32>
    %273 = arith.addf %267, %272 : vector<8x144xf32>
    %c44 = arith.constant 44 : index
    %274 = memref.load %arg1[%c44] : memref<52xf32, #tpu.memory_space<smem>>
    %c19_132 = arith.constant 19 : index
    %c0_133 = arith.constant 0 : index
    %c0_134 = arith.constant 0 : index
    %275 = vector.load %arg0[%c19_132, %c0_133, %c0_134] : memref<25x8x144xf32, #tpu.memory_space<vmem>>, vector<1x8x144xf32>
    %276 = vector.shape_cast %275 : vector<1x8x144xf32> to vector<8x144xf32>
    %277 = vector.broadcast %274 : f32 to vector<8x144xf32>
    %278 = arith.mulf %277, %276 : vector<8x144xf32>
    %279 = arith.addf %273, %278 : vector<8x144xf32>
    %c45 = arith.constant 45 : index
    %280 = memref.load %arg1[%c45] : memref<52xf32, #tpu.memory_space<smem>>
    %c20_135 = arith.constant 20 : index
    %c0_136 = arith.constant 0 : index
    %c0_137 = arith.constant 0 : index
    %281 = vector.load %arg0[%c20_135, %c0_136, %c0_137] : memref<25x8x144xf32, #tpu.memory_space<vmem>>, vector<1x8x144xf32>
    %282 = vector.shape_cast %281 : vector<1x8x144xf32> to vector<8x144xf32>
    %283 = vector.broadcast %280 : f32 to vector<8x144xf32>
    %284 = arith.mulf %283, %282 : vector<8x144xf32>
    %285 = arith.addf %279, %284 : vector<8x144xf32>
    %c46 = arith.constant 46 : index
    %286 = memref.load %arg1[%c46] : memref<52xf32, #tpu.memory_space<smem>>
    %c21_138 = arith.constant 21 : index
    %c0_139 = arith.constant 0 : index
    %c0_140 = arith.constant 0 : index
    %287 = vector.load %arg0[%c21_138, %c0_139, %c0_140] : memref<25x8x144xf32, #tpu.memory_space<vmem>>, vector<1x8x144xf32>
    %288 = vector.shape_cast %287 : vector<1x8x144xf32> to vector<8x144xf32>
    %289 = vector.broadcast %286 : f32 to vector<8x144xf32>
    %290 = arith.mulf %289, %288 : vector<8x144xf32>
    %291 = arith.addf %285, %290 : vector<8x144xf32>
    %c47 = arith.constant 47 : index
    %292 = memref.load %arg1[%c47] : memref<52xf32, #tpu.memory_space<smem>>
    %c22_141 = arith.constant 22 : index
    %c0_142 = arith.constant 0 : index
    %c0_143 = arith.constant 0 : index
    %293 = vector.load %arg0[%c22_141, %c0_142, %c0_143] : memref<25x8x144xf32, #tpu.memory_space<vmem>>, vector<1x8x144xf32>
    %294 = vector.shape_cast %293 : vector<1x8x144xf32> to vector<8x144xf32>
    %295 = vector.broadcast %292 : f32 to vector<8x144xf32>
    %296 = arith.mulf %295, %294 : vector<8x144xf32>
    %297 = arith.addf %291, %296 : vector<8x144xf32>
    %c48 = arith.constant 48 : index
    %298 = memref.load %arg1[%c48] : memref<52xf32, #tpu.memory_space<smem>>
    %c23_144 = arith.constant 23 : index
    %c0_145 = arith.constant 0 : index
    %c0_146 = arith.constant 0 : index
    %299 = vector.load %arg0[%c23_144, %c0_145, %c0_146] : memref<25x8x144xf32, #tpu.memory_space<vmem>>, vector<1x8x144xf32>
    %300 = vector.shape_cast %299 : vector<1x8x144xf32> to vector<8x144xf32>
    %301 = vector.broadcast %298 : f32 to vector<8x144xf32>
    %302 = arith.mulf %301, %300 : vector<8x144xf32>
    %303 = arith.addf %297, %302 : vector<8x144xf32>
    %c49 = arith.constant 49 : index
    %304 = memref.load %arg1[%c49] : memref<52xf32, #tpu.memory_space<smem>>
    %c24_147 = arith.constant 24 : index
    %c0_148 = arith.constant 0 : index
    %c0_149 = arith.constant 0 : index
    %305 = vector.load %arg0[%c24_147, %c0_148, %c0_149] : memref<25x8x144xf32, #tpu.memory_space<vmem>>, vector<1x8x144xf32>
    %306 = vector.shape_cast %305 : vector<1x8x144xf32> to vector<8x144xf32>
    %307 = vector.broadcast %304 : f32 to vector<8x144xf32>
    %308 = arith.mulf %307, %306 : vector<8x144xf32>
    %309 = arith.addf %303, %308 : vector<8x144xf32>
    %cst_150 = arith.constant 0.000000e+00 : f32
    %310 = vector.broadcast %cst_150 : f32 to vector<8x144xf32>
    %311 = arith.maximumf %309, %310 : vector<8x144xf32>
    %c4_i32_151 = arith.constant 4 : i32
    %312 = tpu.dynamic_rotate %311 by %c4_i32_151 dim 0 : vector<8x144xf32>, i32 -> vector<8x144xf32>
    %313 = arith.maximumf %311, %312 : vector<8x144xf32>
    %c2_i32_152 = arith.constant 2 : i32
    %314 = tpu.dynamic_rotate %313 by %c2_i32_152 dim 0 : vector<8x144xf32>, i32 -> vector<8x144xf32>
    %315 = arith.maximumf %313, %314 : vector<8x144xf32>
    %c0_153 = arith.constant 0 : index
    %c0_154 = arith.constant 0 : index
    %316 = vector.load %arg2[%c0_153, %c0_154] : memref<288x10xf32, #tpu.memory_space<vmem>>, vector<144x10xf32>
    %cst_155 = arith.constant dense<0.000000e+00> : vector<8x10xf32>
    %317 = tpu.matmul %157, %316, %cst_155 {dimension_numbers = #tpu.dot_dimension_numbers<[1], [0], [0], [1], [0, 0, 1, 1], [], []>} : vector<8x144xf32>, vector<144x10xf32>, vector<8x10xf32> -> vector<8x10xf32>
    %c144 = arith.constant 144 : index
    %c0_156 = arith.constant 0 : index
    %318 = vector.load %arg2[%c144, %c0_156] : memref<288x10xf32, #tpu.memory_space<vmem>>, vector<144x10xf32>
    %cst_157 = arith.constant dense<0.000000e+00> : vector<8x10xf32>
    %319 = tpu.matmul %315, %318, %cst_157 {dimension_numbers = #tpu.dot_dimension_numbers<[1], [0], [0], [1], [0, 0, 1, 1], [], []>} : vector<8x144xf32>, vector<144x10xf32>, vector<8x10xf32> -> vector<8x10xf32>
    %320 = arith.addf %317, %319 : vector<8x10xf32>
    %321 = vector.extract_strided_slice %320 {offsets = [0, 0], sizes = [2, 10], strides = [1, 1]} : vector<8x10xf32> to vector<2x10xf32>
    %c0_158 = arith.constant 0 : index
    %c0_159 = arith.constant 0 : index
    %322 = vector.load %arg3[%c0_158, %c0_159] : memref<2x10xf32, #tpu.memory_space<vmem>>, vector<2x10xf32>
    tpu.vector_store %arg3[%c0_158, %c0_159], %321 {strides = array<i32>} : memref<2x10xf32, #tpu.memory_space<vmem>>, vector<2x10xf32>,
    return
  }
}

</mosaic_0001>

<llo_original>
// kernel: model_forward.1
$region0: #{model_forward.1}
  #allocation0 [shape = 'u32[]', space=smem, size = 0x4, offset = 0x4, fixed_abs, tag = 'smem constant byte address 0x4 - core index']
  #allocation1 [shape = 'u32[144,128]{1,0:T(1,128)}', space=vmem, size = 0x12000, scoped, tag = 'internal scratch']
  %s0 = inlined_call_operand.vmem [shape: f32[25,8,144], index: 0, kind: input, shape index: {}]
  %s1 = inlined_call_operand.vmem [shape: f32[52], index: 1, kind: input, shape index: {}]
  %s2 = inlined_call_operand.vmem [shape: f32[288,10], index: 2, kind: input, shape index: {}]
  %s3 = inlined_call_operand.vmem [shape: f32[2,10], index: 3, kind: output, shape index: {}]
  %s4 = sld [smem:[#allocation0]]
  $region26: #{model_forward.1} parent=0
    _
  %s6 = ssub.s32 1, %s4
  %s7 = scalar_select 0, %s6, %s4
  $region1: #{model_forward.1} parent=0
    #allocation2 [shape = 'u8[512]{0}', space=smem, size = 0x200, scoped, tag = 'input window, operand 1, single buffered']
    #allocation3 [shape = 's32[1]{0}', space=sflag, size = 0x4, scoped, tag = 'scoped memory for model_forward.1']
    %8 = vsyncpa [#allocation3], 0
    // Predicated region
    $region2: #{model_forward.1} parent=1 // pred_check
      _
    $region3: #{model_forward.1} parent=1 // pred_check_branch
      %10 = sbr.rel (0) target = $region5
    $region4: #{model_forward.1} parent=1 // pred_region
      _
    $region5: #{model_forward.1} parent=1 // pred_fallthru
      _
    // Predicated region
    $region6: #{model_forward.1} parent=1 // pred_check
      _
    $region7: #{model_forward.1} parent=1 // pred_check_branch
      %12 = sbr.rel (0) target = $region9
    $region8: #{model_forward.1} parent=1 // pred_region
      %s14 = ssub.s32 16, 16
      %15 = vsyncadd [#allocation3], %s14
      %s17 = sshll.u32 %s1, 4
      %s18 = int_to_ptr.vmem [resolvable:$true] %s17
      %20 = dma.vmem_to_smem %s18, 16, [#allocation2], [#allocation3]
    $region9: #{model_forward.1} parent=1 // pred_fallthru
      _
    // Predicated region
    $region10: #{model_forward.1} parent=1 // pred_check
      _
    $region11: #{model_forward.1} parent=1 // pred_check_branch
      %22 = sbr.rel (0) target = $region13
    $region12: #{model_forward.1} parent=1 // pred_region
      _
    $region13: #{model_forward.1} parent=1 // pred_fallthru
      _
    // Predicated region
    $region14: #{model_forward.1} parent=1 // pred_check
      _
    $region15: #{model_forward.1} parent=1 // pred_check_branch
      %24 = sbr.rel (0) target = $region17
    $region16: #{model_forward.1} parent=1 // pred_region
      %25 = dma.done [#allocation3], 16
    $region17: #{model_forward.1} parent=1 // pred_fallthru
      _
    %26 = sfence
    %s27 = sld [smem:[#allocation2]]
    %v28 = vld [vmem:[%s0] sm:$0xff]
    %v29 = vld [vmem:[%s0 + $0x8] sm:$0xff]
    %v30 = vstv %s27
    %v31 = vmul.f32 %v30, %v28
    %v32 = vmul.f32 %v30, %v29
    %s33 = sld [smem:[#allocation2 + $0x32]]
    %v34 = vstv %s33
    %v35 = vadd.f32 %v31, %v34
    %v36 = vadd.f32 %v32, %v34
    %s37 = sld [smem:[#allocation2 + $0x1]]
    %s38 = scalar_lea.vmem %s0, 16
    %v39 = vld [vmem:[%s38] sm:$0xff]
    %v40 = vld [vmem:[%s38 + $0x8] sm:$0xff]
    %v41 = vstv %s37
    %v42 = vmul.f32 %v41, %v39
    %v43 = vmul.f32 %v41, %v40
    %v44 = vadd.f32 %v35, %v42
    %v45 = vadd.f32 %v36, %v43
    %s46 = sld [smem:[#allocation2 + $0x2]]
    %s47 = scalar_lea.vmem %s0, 32
    %v48 = vld [vmem:[%s47] sm:$0xff]
    %v49 = vld [vmem:[%s47 + $0x8] sm:$0xff]
    %v50 = vstv %s46
    %v51 = vmul.f32 %v50, %v48
    %v52 = vmul.f32 %v50, %v49
    %v53 = vadd.f32 %v44, %v51
    %v54 = vadd.f32 %v45, %v52
    %s55 = sld [smem:[#allocation2 + $0x3]]
    %s56 = scalar_lea.vmem %s0, 48
    %v57 = vld [vmem:[%s56] sm:$0xff]
    %v58 = vld [vmem:[%s56 + $0x8] sm:$0xff]
    %v59 = vstv %s55
    %v60 = vmul.f32 %v59, %v57
    %v61 = vmul.f32 %v59, %v58
    %v62 = vadd.f32 %v53, %v60
    %v63 = vadd.f32 %v54, %v61
    %s64 = sld [smem:[#allocation2 + $0x4]]
    %s65 = scalar_lea.vmem %s0, 64
    %v66 = vld [vmem:[%s65] sm:$0xff]
    %v67 = vld [vmem:[%s65 + $0x8] sm:$0xff]
    %v68 = vstv %s64
    %v69 = vmul.f32 %v68, %v66
    %v70 = vmul.f32 %v68, %v67
    %v71 = vadd.f32 %v62, %v69
    %v72 = vadd.f32 %v63, %v70
    %s73 = sld [smem:[#allocation2 + $0x5]]
    %s74 = scalar_lea.vmem %s0, 80
    %v75 = vld [vmem:[%s74] sm:$0xff]
    %v76 = vld [vmem:[%s74 + $0x8] sm:$0xff]
    %v77 = vstv %s73
    %v78 = vmul.f32 %v77, %v75
    %v79 = vmul.f32 %v77, %v76
    %v80 = vadd.f32 %v71, %v78
    %v81 = vadd.f32 %v72, %v79
    %s82 = sld [smem:[#allocation2 + $0x6]]
    %s83 = scalar_lea.vmem %s0, 96
    %v84 = vld [vmem:[%s83] sm:$0xff]
    %v85 = vld [vmem:[%s83 + $0x8] sm:$0xff]
    %v86 = vstv %s82
    %v87 = vmul.f32 %v86, %v84
    %v88 = vmul.f32 %v86, %v85
    %v89 = vadd.f32 %v80, %v87
    %v90 = vadd.f32 %v81, %v88
    %s91 = sld [smem:[#allocation2 + $0x7]]
    %s92 = scalar_lea.vmem %s0, 112
    %v93 = vld [vmem:[%s92] sm:$0xff]
    %v94 = vld [vmem:[%s92 + $0x8] sm:$0xff]
    %v95 = vstv %s91
    %v96 = vmul.f32 %v95, %v93
    %v97 = vmul.f32 %v95, %v94
    %v98 = vadd.f32 %v89, %v96
    %v99 = vadd.f32 %v90, %v97
    %s100 = sld [smem:[#allocation2 + $0x8]]
    %s101 = scalar_lea.vmem %s0, 128
    %v102 = vld [vmem:[%s101] sm:$0xff]
    %v103 = vld [vmem:[%s101 + $0x8] sm:$0xff]
    %v104 = vstv %s100
    %v105 = vmul.f32 %v104, %v102
    %v106 = vmul.f32 %v104, %v103
    %v107 = vadd.f32 %v98, %v105
    %v108 = vadd.f32 %v99, %v106
    %s109 = sld [smem:[#allocation2 + $0x9]]
    %s110 = scalar_lea.vmem %s0, 144
    %v111 = vld [vmem:[%s110] sm:$0xff]
    %v112 = vld [vmem:[%s110 + $0x8] sm:$0xff]
    %v113 = vstv %s109
    %v114 = vmul.f32 %v113, %v111
    %v115 = vmul.f32 %v113, %v112
    %v116 = vadd.f32 %v107, %v114
    %v117 = vadd.f32 %v108, %v115
    %s118 = sld [smem:[#allocation2 + $0xa]]
    %s119 = scalar_lea.vmem %s0, 160
    %v120 = vld [vmem:[%s119] sm:$0xff]
    %v121 = vld [vmem:[%s119 + $0x8] sm:$0xff]
    %v122 = vstv %s118
    %v123 = vmul.f32 %v122, %v120
    %v124 = vmul.f32 %v122, %v121
    %v125 = vadd.f32 %v116, %v123
    %v126 = vadd.f32 %v117, %v124
    %s127 = sld [smem:[#allocation2 + $0xb]]
    %s128 = scalar_lea.vmem %s0, 176
    %v129 = vld [vmem:[%s128] sm:$0xff]
    %v130 = vld [vmem:[%s128 + $0x8] sm:$0xff]
    %v131 = vstv %s127
    %v132 = vmul.f32 %v131, %v129
    %v133 = vmul.f32 %v131, %v130
    %v134 = vadd.f32 %v125, %v132
    %v135 = vadd.f32 %v126, %v133
    %s136 = sld [smem:[#allocation2 + $0xc]]
    %s137 = scalar_lea.vmem %s0, 192
    %v138 = vld [vmem:[%s137] sm:$0xff]
    %v139 = vld [vmem:[%s137 + $0x8] sm:$0xff]
    %v140 = vstv %s136
    %v141 = vmul.f32 %v140, %v138
    %v142 = vmul.f32 %v140, %v139
    %v143 = vadd.f32 %v134, %v141
    %v144 = vadd.f32 %v135, %v142
    %s145 = sld [smem:[#allocation2 + $0xd]]
    %s146 = scalar_lea.vmem %s0, 208
    %v147 = vld [vmem:[%s146] sm:$0xff]
    %v148 = vld [vmem:[%s146 + $0x8] sm:$0xff]
    %v149 = vstv %s145
    %v150 = vmul.f32 %v149, %v147
    %v151 = vmul.f32 %v149, %v148
    %v152 = vadd.f32 %v143, %v150
    %v153 = vadd.f32 %v144, %v151
    %s154 = sld [smem:[#allocation2 + $0xe]]
    %s155 = scalar_lea.vmem %s0, 224
    %v156 = vld [vmem:[%s155] sm:$0xff]
    %v157 = vld [vmem:[%s155 + $0x8] sm:$0xff]
    %v158 = vstv %s154
    %v159 = vmul.f32 %v158, %v156
    %v160 = vmul.f32 %v158, %v157
    %v161 = vadd.f32 %v152, %v159
    %v162 = vadd.f32 %v153, %v160
    %s163 = sld [smem:[#allocation2 + $0xf]]
    %s164 = scalar_lea.vmem %s0, 240
    %v165 = vld [vmem:[%s164] sm:$0xff]
    %v166 = vld [vmem:[%s164 + $0x8] sm:$0xff]
    %v167 = vstv %s163
    %v168 = vmul.f32 %v167, %v165
    %v169 = vmul.f32 %v167, %v166
    %v170 = vadd.f32 %v161, %v168
    %v171 = vadd.f32 %v162, %v169
    %s172 = sld [smem:[#allocation2 + $0x10]]
    %s173 = scalar_lea.vmem %s0, 256
    %v174 = vld [vmem:[%s173] sm:$0xff]
    %v175 = vld [vmem:[%s173 + $0x8] sm:$0xff]
    %v176 = vstv %s172
    %v177 = vmul.f32 %v176, %v174
    %v178 = vmul.f32 %v176, %v175
    %v179 = vadd.f32 %v170, %v177
    %v180 = vadd.f32 %v171, %v178
    %s181 = sld [smem:[#allocation2 + $0x11]]
    %s182 = scalar_lea.vmem %s0, 272
    %v183 = vld [vmem:[%s182] sm:$0xff]
    %v184 = vld [vmem:[%s182 + $0x8] sm:$0xff]
    %v185 = vstv %s181
    %v186 = vmul.f32 %v185, %v183
    %v187 = vmul.f32 %v185, %v184
    %v188 = vadd.f32 %v179, %v186
    %v189 = vadd.f32 %v180, %v187
    %s190 = sld [smem:[#allocation2 + $0x12]]
    %s191 = scalar_lea.vmem %s0, 288
    %v192 = vld [vmem:[%s191] sm:$0xff]
    %v193 = vld [vmem:[%s191 + $0x8] sm:$0xff]
    %v194 = vstv %s190
    %v195 = vmul.f32 %v194, %v192
    %v196 = vmul.f32 %v194, %v193
    %v197 = vadd.f32 %v188, %v195
    %v198 = vadd.f32 %v189, %v196
    %s199 = sld [smem:[#allocation2 + $0x13]]
    %s200 = scalar_lea.vmem %s0, 304
    %v201 = vld [vmem:[%s200] sm:$0xff]
    %v202 = vld [vmem:[%s200 + $0x8] sm:$0xff]
    %v203 = vstv %s199
    %v204 = vmul.f32 %v203, %v201
    %v205 = vmul.f32 %v203, %v202
    %v206 = vadd.f32 %v197, %v204
    %v207 = vadd.f32 %v198, %v205
    %s208 = sld [smem:[#allocation2 + $0x14]]
    %s209 = scalar_lea.vmem %s0, 320
    %v210 = vld [vmem:[%s209] sm:$0xff]
    %v211 = vld [vmem:[%s209 + $0x8] sm:$0xff]
    %v212 = vstv %s208
    %v213 = vmul.f32 %v212, %v210
    %v214 = vmul.f32 %v212, %v211
    %v215 = vadd.f32 %v206, %v213
    %v216 = vadd.f32 %v207, %v214
    %s217 = sld [smem:[#allocation2 + $0x15]]
    %s218 = scalar_lea.vmem %s0, 336
    %v219 = vld [vmem:[%s218] sm:$0xff]
    %v220 = vld [vmem:[%s218 + $0x8] sm:$0xff]
    %v221 = vstv %s217
    %v222 = vmul.f32 %v221, %v219
    %v223 = vmul.f32 %v221, %v220
    %v224 = vadd.f32 %v215, %v222
    %v225 = vadd.f32 %v216, %v223
    %s226 = sld [smem:[#allocation2 + $0x16]]
    %s227 = scalar_lea.vmem %s0, 352
    %v228 = vld [vmem:[%s227] sm:$0xff]
    %v229 = vld [vmem:[%s227 + $0x8] sm:$0xff]
    %v230 = vstv %s226
    %v231 = vmul.f32 %v230, %v228
    %v232 = vmul.f32 %v230, %v229
    %v233 = vadd.f32 %v224, %v231
    %v234 = vadd.f32 %v225, %v232
    %s235 = sld [smem:[#allocation2 + $0x17]]
    %s236 = scalar_lea.vmem %s0, 368
    %v237 = vld [vmem:[%s236] sm:$0xff]
    %v238 = vld [vmem:[%s236 + $0x8] sm:$0xff]
    %v239 = vstv %s235
    %v240 = vmul.f32 %v239, %v237
    %v241 = vmul.f32 %v239, %v238
    %v242 = vadd.f32 %v233, %v240
    %v243 = vadd.f32 %v234, %v241
    %s244 = sld [smem:[#allocation2 + $0x18]]
    %s245 = scalar_lea.vmem %s0, 384
    %v246 = vld [vmem:[%s245] sm:$0xff]
    %v247 = vld [vmem:[%s245 + $0x8] sm:$0xff]
    %v248 = vstv %s244
    %v249 = vmul.f32 %v248, %v246
    %v250 = vmul.f32 %v248, %v247
    %v251 = vadd.f32 %v242, %v249
    %v252 = vadd.f32 %v243, %v250
    %v253 = vmax.f32 %v251, 0.0
    %v254 = vmax.f32 %v252, 0.0
    %v255 = vrot.slane %v253, 4
    %v256 = vrot.slane %v254, 4
    %v257 = vmax.f32 %v253, %v255
    %v258 = vmax.f32 %v254, %v256
    %v259 = vrot.slane %v257, 6
    %v260 = vrot.slane %v258, 6
    %v261 = vmax.f32 %v257, %v259
    %v262 = vmax.f32 %v258, %v260
    %s263 = sld [smem:[#allocation2 + $0x19]]
    %v264 = vstv %s263
    %v265 = vmul.f32 %v264, %v28
    %v266 = vmul.f32 %v264, %v29
    %s267 = sld [smem:[#allocation2 + $0x33]]
    %v268 = vstv %s267
    %v269 = vadd.f32 %v265, %v268
    %v270 = vadd.f32 %v266, %v268
    %s271 = sld [smem:[#allocation2 + $0x1a]]
    %v272 = vstv %s271
    %v273 = vmul.f32 %v272, %v39
    %v274 = vmul.f32 %v272, %v40
    %v275 = vadd.f32 %v269, %v273
    %v276 = vadd.f32 %v270, %v274
    %s277 = sld [smem:[#allocation2 + $0x1b]]
    %v278 = vstv %s277
    %v279 = vmul.f32 %v278, %v48
    %v280 = vmul.f32 %v278, %v49
    %v281 = vadd.f32 %v275, %v279
    %v282 = vadd.f32 %v276, %v280
    %s283 = sld [smem:[#allocation2 + $0x1c]]
    %v284 = vstv %s283
    %v285 = vmul.f32 %v284, %v57
    %v286 = vmul.f32 %v284, %v58
    %v287 = vadd.f32 %v281, %v285
    %v288 = vadd.f32 %v282, %v286
    %s289 = sld [smem:[#allocation2 + $0x1d]]
    %v290 = vstv %s289
    %v291 = vmul.f32 %v290, %v66
    %v292 = vmul.f32 %v290, %v67
    %v293 = vadd.f32 %v287, %v291
    %v294 = vadd.f32 %v288, %v292
    %s295 = sld [smem:[#allocation2 + $0x1e]]
    %v296 = vstv %s295
    %v297 = vmul.f32 %v296, %v75
    %v298 = vmul.f32 %v296, %v76
    %v299 = vadd.f32 %v293, %v297
    %v300 = vadd.f32 %v294, %v298
    %s301 = sld [smem:[#allocation2 + $0x1f]]
    %v302 = vstv %s301
    %v303 = vmul.f32 %v302, %v84
    %v304 = vmul.f32 %v302, %v85
    %v305 = vadd.f32 %v299, %v303
    %v306 = vadd.f32 %v300, %v304
    %s307 = sld [smem:[#allocation2 + $0x20]]
    %v308 = vstv %s307
    %v309 = vmul.f32 %v308, %v93
    %v310 = vmul.f32 %v308, %v94
    %v311 = vadd.f32 %v305, %v309
    %v312 = vadd.f32 %v306, %v310
    %s313 = sld [smem:[#allocation2 + $0x21]]
    %v314 = vstv %s313
    %v315 = vmul.f32 %v314, %v102
    %v316 = vmul.f32 %v314, %v103
    %v317 = vadd.f32 %v311, %v315
    %v318 = vadd.f32 %v312, %v316
    %s319 = sld [smem:[#allocation2 + $0x22]]
    %v320 = vstv %s319
    %v321 = vmul.f32 %v320, %v111
    %v322 = vmul.f32 %v320, %v112
    %v323 = vadd.f32 %v317, %v321
    %v324 = vadd.f32 %v318, %v322
    %s325 = sld [smem:[#allocation2 + $0x23]]
    %v326 = vstv %s325
    %v327 = vmul.f32 %v326, %v120
    %v328 = vmul.f32 %v326, %v121
    %v329 = vadd.f32 %v323, %v327
    %v330 = vadd.f32 %v324, %v328
    %s331 = sld [smem:[#allocation2 + $0x24]]
    %v332 = vstv %s331
    %v333 = vmul.f32 %v332, %v129
    %v334 = vmul.f32 %v332, %v130
    %v335 = vadd.f32 %v329, %v333
    %v336 = vadd.f32 %v330, %v334
    %s337 = sld [smem:[#allocation2 + $0x25]]
    %v338 = vstv %s337
    %v339 = vmul.f32 %v338, %v138
    %v340 = vmul.f32 %v338, %v139
    %v341 = vadd.f32 %v335, %v339
    %v342 = vadd.f32 %v336, %v340
    %s343 = sld [smem:[#allocation2 + $0x26]]
    %v344 = vstv %s343
    %v345 = vmul.f32 %v344, %v147
    %v346 = vmul.f32 %v344, %v148
    %v347 = vadd.f32 %v341, %v345
    %v348 = vadd.f32 %v342, %v346
    %s349 = sld [smem:[#allocation2 + $0x27]]
    %v350 = vstv %s349
    %v351 = vmul.f32 %v350, %v156
    %v352 = vmul.f32 %v350, %v157
    %v353 = vadd.f32 %v347, %v351
    %v354 = vadd.f32 %v348, %v352
    %s355 = sld [smem:[#allocation2 + $0x28]]
    %v356 = vstv %s355
    %v357 = vmul.f32 %v356, %v165
    %v358 = vmul.f32 %v356, %v166
    %v359 = vadd.f32 %v353, %v357
    %v360 = vadd.f32 %v354, %v358
    %s361 = sld [smem:[#allocation2 + $0x29]]
    %v362 = vstv %s361
    %v363 = vmul.f32 %v362, %v174
    %v364 = vmul.f32 %v362, %v175
    %v365 = vadd.f32 %v359, %v363
    %v366 = vadd.f32 %v360, %v364
    %s367 = sld [smem:[#allocation2 + $0x2a]]
    %v368 = vstv %s367
    %v369 = vmul.f32 %v368, %v183
    %v370 = vmul.f32 %v368, %v184
    %v371 = vadd.f32 %v365, %v369
    %v372 = vadd.f32 %v366, %v370
    %s373 = sld [smem:[#allocation2 + $0x2b]]
    %v374 = vstv %s373
    %v375 = vmul.f32 %v374, %v192
    %v376 = vmul.f32 %v374, %v193
    %v377 = vadd.f32 %v371, %v375
    %v378 = vadd.f32 %v372, %v376
    %s379 = sld [smem:[#allocation2 + $0x2c]]
    %v380 = vstv %s379
    %v381 = vmul.f32 %v380, %v201
    %v382 = vmul.f32 %v380, %v202
    %v383 = vadd.f32 %v377, %v381
    %v384 = vadd.f32 %v378, %v382
    %s385 = sld [smem:[#allocation2 + $0x2d]]
    %v386 = vstv %s385
    %v387 = vmul.f32 %v386, %v210
    %v388 = vmul.f32 %v386, %v211
    %v389 = vadd.f32 %v383, %v387
    %v390 = vadd.f32 %v384, %v388
    %s391 = sld [smem:[#allocation2 + $0x2e]]
    %v392 = vstv %s391
    %v393 = vmul.f32 %v392, %v219
    %v394 = vmul.f32 %v392, %v220
    %v395 = vadd.f32 %v389, %v393
    %v396 = vadd.f32 %v390, %v394
    %s397 = sld [smem:[#allocation2 + $0x2f]]
    %v398 = vstv %s397
    %v399 = vmul.f32 %v398, %v228
    %v400 = vmul.f32 %v398, %v229
    %v401 = vadd.f32 %v395, %v399
    %v402 = vadd.f32 %v396, %v400
    %s403 = sld [smem:[#allocation2 + $0x30]]
    %v404 = vstv %s403
    %v405 = vmul.f32 %v404, %v237
    %v406 = vmul.f32 %v404, %v238
    %v407 = vadd.f32 %v401, %v405
    %v408 = vadd.f32 %v402, %v406
    %s409 = sld [smem:[#allocation2 + $0x31]]
    %v410 = vstv %s409
    %v411 = vmul.f32 %v410, %v246
    %v412 = vmul.f32 %v410, %v247
    %v413 = vadd.f32 %v407, %v411
    %v414 = vadd.f32 %v408, %v412
    %v415 = vmax.f32 %v413, 0.0
    %v416 = vmax.f32 %v414, 0.0
    %v417 = vrot.slane %v415, 4
    %v418 = vrot.slane %v416, 4
    %v419 = vmax.f32 %v415, %v417
    %v420 = vmax.f32 %v416, %v418
    %v421 = vrot.slane %v419, 6
    %v422 = vrot.slane %v420, 6
    %v423 = vmax.f32 %v419, %v421
    %v424 = vmax.f32 %v420, %v422
    %v425 = vld [vmem:[%s2] sm:$0xff]
    %v426 = vld [vmem:[%s2 + $0x8] sm:$0xff]
    %v427 = vld [vmem:[%s2 + $0x10] sm:$0xff]
    %v428 = vld [vmem:[%s2 + $0x18] sm:$0xff]
    %v429 = vld [vmem:[%s2 + $0x20] sm:$0xff]
    %v430 = vld [vmem:[%s2 + $0x28] sm:$0xff]
    %v431 = vld [vmem:[%s2 + $0x30] sm:$0xff]
    %v432 = vld [vmem:[%s2 + $0x38] sm:$0xff]
    %v433 = vld [vmem:[%s2 + $0x40] sm:$0xff]
    %v434 = vld [vmem:[%s2 + $0x48] sm:$0xff]
    %v435 = vld [vmem:[%s2 + $0x50] sm:$0xff]
    %v436 = vld [vmem:[%s2 + $0x58] sm:$0xff]
    %v437 = vld [vmem:[%s2 + $0x60] sm:$0xff]
    %v438 = vld [vmem:[%s2 + $0x68] sm:$0xff]
    %v439 = vld [vmem:[%s2 + $0x70] sm:$0xff]
    %v440 = vld [vmem:[%s2 + $0x78] sm:$0xff]
    %v441 = vld [vmem:[%s2 + $0x80] sm:$0xff]
    %v442 = vld [vmem:[%s2 + $0x88] sm:$0xff]
    %v443 = vld [vmem:[%s2 + $0x90] sm:$0xff]
    %v444 = vld [vmem:[%s2 + $0x98] sm:$0xff]
    %v445 = vld [vmem:[%s2 + $0xa0] sm:$0xff]
    %v446 = vld [vmem:[%s2 + $0xa8] sm:$0xff]
    %v447 = vld [vmem:[%s2 + $0xb0] sm:$0xff]
    %v448 = vld [vmem:[%s2 + $0xb8] sm:$0xff]
    %v449 = vld [vmem:[%s2 + $0xc0] sm:$0xff]
    %v450 = vld [vmem:[%s2 + $0xc8] sm:$0xff]
    %v451 = vld [vmem:[%s2 + $0xd0] sm:$0xff]
    %v452 = vld [vmem:[%s2 + $0xd8] sm:$0xff]
    %v453 = vld [vmem:[%s2 + $0xe0] sm:$0xff]
    %v454 = vld [vmem:[%s2 + $0xe8] sm:$0xff]
    %v455 = vld [vmem:[%s2 + $0xf0] sm:$0xff]
    %v456 = vld [vmem:[%s2 + $0xf8] sm:$0xff]
    %v457 = vld [vmem:[%s2 + $0x100] sm:$0xff]
    %v458 = vld [vmem:[%s2 + $0x108] sm:$0xff]
    %v459 = vld [vmem:[%s2 + $0x110] sm:$0xff]
    %v460 = vld [vmem:[%s2 + $0x118] sm:$0xff]
    %vm461 = vcmask 130048
    %v463 = vsel %vm461, %v424, 0
    %465 = vmatprep.subr.mxu0 0.0
    %466 = vmatpush1.msra.mxu0 %v443
    %467 = vmatprep.subr.mxu0 0.0
    %468 = vmatpush1.msra.mxu0 %v444
    %469 = vmatprep.subr.mxu0 0.0
    %470 = vmatpush1.msra.mxu0 %v445
    %471 = vmatprep.subr.mxu0 0.0
    %472 = vmatpush1.msra.mxu0 %v446
    %473 = vmatprep.subr.mxu0 0.0
    %474 = vmatpush1.msra.mxu0 %v447
    %475 = vmatprep.subr.mxu0 0.0
    %476 = vmatpush1.msra.mxu0 %v448
    %477 = vmatprep.subr.mxu0 0.0
    %478 = vmatpush1.msra.mxu0 %v449
    %479 = vmatprep.subr.mxu0 0.0
    %480 = vmatpush1.msra.mxu0 %v450
    %481 = vmatprep.subr.mxu0 0.0
    %482 = vmatpush1.msra.mxu0 %v451
    %483 = vmatprep.subr.mxu0 0.0
    %484 = vmatpush1.msra.mxu0 %v452
    %485 = vmatprep.subr.mxu0 0.0
    %486 = vmatpush1.msra.mxu0 %v453
    %487 = vmatprep.subr.mxu0 0.0
    %488 = vmatpush1.msra.mxu0 %v454
    %489 = vmatprep.subr.mxu0 0.0
    %490 = vmatpush1.msra.mxu0 %v455
    %491 = vmatprep.subr.mxu0 0.0
    %492 = vmatpush1.msra.mxu0 %v456
    %493 = vmatprep.subr.mxu0 0.0
    %494 = vmatpush1.msra.mxu0 %v457
    %495 = vmatprep.subr.mxu0 0.0
    %496 = vmatpush1.msra.mxu0 %v458
    %497 = vmatprep.subr.mxu0 0.0
    %498 = vmatpush1.msra.mxu0 %v459
    %499 = vmatprep.subr.mxu0 0.0
    %500 = vmatpush1.msra.mxu0 %v460
    %501 = vmatprep.subr.mxu0 0.0
    %502 = vmatpush1.msra.mxu0 0.0
    %503 = vmatprep.subr.mxu0 0.0
    %504 = vmatpush1.msra.mxu0 0.0
    %505 = vmatprep.subr.mxu0 0.0
    %506 = vmatpush1.msra.mxu0 0.0
    %507 = vmatprep.subr.mxu0 0.0
    %508 = vmatpush1.msra.mxu0 0.0
    %509 = vmatprep.subr.mxu0 0.0
    %510 = vmatpush1.msra.mxu0 0.0
    %511 = vmatprep.subr.mxu0 0.0
    %512 = vmatpush1.msra.mxu0 0.0
    %513 = vmatprep.subr.mxu0 0.0
    %514 = vmatpush1.msra.mxu0 0.0
    %515 = vmatprep.subr.mxu0 0.0
    %516 = vmatpush1.msra.mxu0 0.0
    %517 = vmatprep.subr.mxu0 0.0
    %518 = vmatpush1.msra.mxu0 0.0
    %519 = vmatprep.subr.mxu0 0.0
    %520 = vmatpush1.msra.mxu0 0.0
    %521 = vmatprep.subr.mxu0 0.0
    %522 = vmatpush1.msra.mxu0 0.0
    %523 = vmatprep.subr.mxu0 0.0
    %524 = vmatpush1.msra.mxu0 0.0
    %525 = vmatprep.subr.mxu0 0.0
    %526 = vmatpush1.msra.mxu0 0.0
    %527 = vmatprep.subr.mxu0 0.0
    %528 = vmatpush1.msra.mxu0 0.0
    %529 = vmatprep.mubr.f32.mxu0 %v463
    %530 = vmatmul.mubr.f32.gmra.mrb[0].mxu0 %v423
    %v531 = vpop.f32.mrb[0].mxu0
    %v532 = vadd.f32 0.0, %v531
    %v533 = vpop.f32.mrb[0].mxu0
    %534 = vdwg.mxu0
    %v536 = vsel %vm461, %v262, 0
    %538 = vmatprep.subr.mxu0 0.0
    %539 = vmatpush1.msra.mxu0 %v425
    %540 = vmatprep.subr.mxu0 0.0
    %541 = vmatpush1.msra.mxu0 %v426
    %542 = vmatprep.subr.mxu0 0.0
    %543 = vmatpush1.msra.mxu0 %v427
    %544 = vmatprep.subr.mxu0 0.0
    %545 = vmatpush1.msra.mxu0 %v428
    %546 = vmatprep.subr.mxu0 0.0
    %547 = vmatpush1.msra.mxu0 %v429
    %548 = vmatprep.subr.mxu0 0.0
    %549 = vmatpush1.msra.mxu0 %v430
    %550 = vmatprep.subr.mxu0 0.0
    %551 = vmatpush1.msra.mxu0 %v431
    %552 = vmatprep.subr.mxu0 0.0
    %553 = vmatpush1.msra.mxu0 %v432
    %554 = vmatprep.subr.mxu0 0.0
    %555 = vmatpush1.msra.mxu0 %v433
    %556 = vmatprep.subr.mxu0 0.0
    %557 = vmatpush1.msra.mxu0 %v434
    %558 = vmatprep.subr.mxu0 0.0
    %559 = vmatpush1.msra.mxu0 %v435
    %560 = vmatprep.subr.mxu0 0.0
    %561 = vmatpush1.msra.mxu0 %v436
    %562 = vmatprep.subr.mxu0 0.0
    %563 = vmatpush1.msra.mxu0 %v437
    %564 = vmatprep.subr.mxu0 0.0
    %565 = vmatpush1.msra.mxu0 %v438
    %566 = vmatprep.subr.mxu0 0.0
    %567 = vmatpush1.msra.mxu0 %v439
    %568 = vmatprep.subr.mxu0 0.0
    %569 = vmatpush1.msra.mxu0 %v440
    %570 = vmatprep.subr.mxu0 0.0
    %571 = vmatpush1.msra.mxu0 %v441
    %572 = vmatprep.subr.mxu0 0.0
    %573 = vmatpush1.msra.mxu0 %v442
    %574 = vmatprep.subr.mxu0 0.0
    %575 = vmatpush1.msra.mxu0 0.0
    %576 = vmatprep.subr.mxu0 0.0
    %577 = vmatpush1.msra.mxu0 0.0
    %578 = vmatprep.subr.mxu0 0.0
    %579 = vmatpush1.msra.mxu0 0.0
    %580 = vmatprep.subr.mxu0 0.0
    %581 = vmatpush1.msra.mxu0 0.0
    %582 = vmatprep.subr.mxu0 0.0
    %583 = vmatpush1.msra.mxu0 0.0
    %584 = vmatprep.subr.mxu0 0.0
    %585 = vmatpush1.msra.mxu0 0.0
    %586 = vmatprep.subr.mxu0 0.0
    %587 = vmatpush1.msra.mxu0 0.0
    %588 = vmatprep.subr.mxu0 0.0
    %589 = vmatpush1.msra.mxu0 0.0
    %590 = vmatprep.subr.mxu0 0.0
    %591 = vmatpush1.msra.mxu0 0.0
    %592 = vmatprep.subr.mxu0 0.0
    %593 = vmatpush1.msra.mxu0 0.0
    %594 = vmatprep.subr.mxu0 0.0
    %595 = vmatpush1.msra.mxu0 0.0
    %596 = vmatprep.subr.mxu0 0.0
    %597 = vmatpush1.msra.mxu0 0.0
    %598 = vmatprep.subr.mxu0 0.0
    %599 = vmatpush1.msra.mxu0 0.0
    %600 = vmatprep.subr.mxu0 0.0
    %601 = vmatpush1.msra.mxu0 0.0
    %602 = vmatprep.mubr.f32.mxu0 %v536
    %603 = vmatmul.mubr.f32.gmra.mrb[0].mxu0 %v261
    %v604 = vpop.f32.mrb[0].mxu0
    %v605 = vadd.f32 %v532, %v604
    %v606 = vpop.f32.mrb[0].mxu0
    %607 = vdwg.mxu0
    %vm608 = vcmask 74752
    %609 = vst.msk [vmem:[%s3] sm:$0x3] %vm608, %v605
    // Predicated region
    $region18: #{model_forward.1} parent=1 // pred_check
      _
    $region19: #{model_forward.1} parent=1 // pred_check_branch
      %611 = sbr.rel (0) target = $region21
    $region20: #{model_forward.1} parent=1 // pred_region
      _
    $region21: #{model_forward.1} parent=1 // pred_fallthru
      _
    // Predicated region
    $region22: #{model_forward.1} parent=1 // pred_check
      _
    $region23: #{model_forward.1} parent=1 // pred_check_branch
      %613 = sbr.rel (0) target = $region25
    $region24: #{model_forward.1} parent=1 // pred_region
      _
    $region25: #{model_forward.1} parent=1 // pred_fallthru
      _
    %614 = vsyncpa [#allocation3], 1

</llo_original>
